<compile_context>
chip_gen: v7x
topology: tpu7x:2x2x1
jax: 0.10.0
libtpu: 0.0.40
codegen_flags: <defaults>
</compile_context>

<pallas_src>
import jax
import jax.numpy as jnp
from jax.experimental import pallas as pl
from jax.experimental.pallas import tpu as pltpu


# The 6 permutations of 3 channels (same table as the PyTorch module).
PERMUTATIONS = jnp.array(
    [[0, 1, 2], [0, 2, 1], [1, 0, 2], [1, 2, 0], [2, 0, 1], [2, 1, 0]],
    dtype=jnp.int32,
)


def _largest_divisor_leq(n: int, k: int) -> int:
    """Largest divisor of n that is <= k (and >= 1)."""
    k = max(1, min(int(n), int(k)))
    while n % k:
        k -= 1
    return k


def _plan_splits(N: int, H: int, W: int, itemsize: int, min_sub_bytes: int):
    """Decide how to slice each per-channel copy into concurrent DMAs.

    Returns (axis, grid, inner, chunk):
      axis  : 0 -> split along batch N, 2 -> split along rows H
      grid  : number of grid steps (2 when possible, for v7x TC parallelism)
      inner : sub-copies per channel per grid step
      chunk : length of each sub-copy along the split axis
    """
    per_channel_bytes = N * H * W * itemsize
    # At most 8 descriptors per channel; never shrink a descriptor below
    # ~min_sub_bytes (per-descriptor / per-chunk overhead dominates there).
    total_target = int(max(1, min(8, per_channel_bytes // max(1, min_sub_bytes))))

    # Prefer splitting along the batch axis: every contiguous run stays a full
    # H*W channel plane.  Fall back to rows when the batch is too small.
    if N >= 8:
        axis, length = 0, N
    else:
        axis, length = 2, H

    grid = 2 if (length >= 2 and length % 2 == 0) else 1   # v7x: one half per TC
    inner = _largest_divisor_leq(length // grid, max(1, total_target // grid))
    chunk = length // (grid * inner)
    return axis, grid, inner, chunk


def _make_channel_swap_kernel(C: int, axis: int, inner: int, chunk: int):
    """Build the pure-DMA kernel body for a fixed split plan."""

    def kernel(perm_ref, colors_hbm, out_hbm, sem):
        # perm_ref: SMEM int32[C] (scalar prefetch).  colors_hbm / out_hbm are
        # raw HBM refs.  Start every descriptor before waiting on any so the
        # DMA engines overlap all C * inner copies of this grid step.
        step = pl.program_id(0)
        copies = []
        for c in range(C):
            src_c = perm_ref[c]
            for s in range(inner):
                start = (step * inner + s) * chunk
                if axis == 0:  # split along batch N
                    src = colors_hbm.at[pl.ds(start, chunk), pl.ds(src_c, 1)]
                    dst = out_hbm.at[pl.ds(start, chunk), pl.ds(c, 1)]
                else:          # split along rows H
                    src = colors_hbm.at[:, pl.ds(src_c, 1), pl.ds(start, chunk), :]
                    dst = out_hbm.at[:, pl.ds(c, 1), pl.ds(start, chunk), :]
                cp = pltpu.make_async_copy(src, dst, sem.at[c, s])
                cp.start()
                copies.append(cp)
        for cp in copies:
            cp.wait()

    return kernel


def channel_swap(colors: jax.Array,
                 perm: jax.Array,
                 *,
                 min_sub_bytes: int = 512 << 10,
                 min_pallas_bytes: int = 64 << 10,
                 use_pallas: bool | None = None) -> jax.Array:
    """Permute the channel axis of `colors` (NCHW) according to `perm` (int32[C])."""
    N, C, H, W = colors.shape
    assert perm.shape == (C,), f"perm must have shape ({C},), got {perm.shape}"
    itemsize = jnp.dtype(colors.dtype).itemsize
    per_channel_bytes = N * H * W * itemsize

    if use_pallas is None:
        use_pallas = per_channel_bytes >= min_pallas_bytes
    if not use_pallas:
        # Tiny channel slabs: the fixed pallas_call launch + scalar prefetch +
        # per-descriptor DMA overhead exceeds the copy itself; let XLA emit a
        # fused gather instead.
        return jnp.take(colors, perm, axis=1)

    axis, grid, inner, chunk = _plan_splits(N, H, W, itemsize, min_sub_bytes)
    kernel = _make_channel_swap_kernel(C, axis, inner, chunk)

    grid_spec = pltpu.PrefetchScalarGridSpec(
        num_scalar_prefetch=1,                         # perm -> SMEM
        grid=(grid,),                                  # parallel halves (v7x: 1 per TC)
        in_specs=[pl.BlockSpec(memory_space=pl.ANY)],  # Colors stays in HBM
        out_specs=pl.BlockSpec(memory_space=pl.ANY),   # output written by DMA only
        scratch_shapes=[pltpu.SemaphoreType.DMA((C, inner))],
    )

    total_bytes = N * C * H * W * itemsize
    return pl.pallas_call(
        kernel,
        out_shape=jax.ShapeDtypeStruct((N, C, H, W), colors.dtype),
        grid_spec=grid_spec,
        compiler_params=pltpu.CompilerParams(dimension_semantics=("parallel",)),
        # Bandwidth-bound copy: read + write of the full tensor.
        cost_estimate=pl.CostEstimate(flops=0, transcendentals=0,
                                      bytes_accessed=2 * total_bytes),
        # NOTE: deliberately no input_output_aliases (see header comment).
    )(perm, colors)


class ChannelSwap:
    """JAX/Pallas port of the PyTorch ChannelSwap module."""

    def __init__(self) -> None:
        self.permutations = PERMUTATIONS

    def get_params(self, key: jax.Array) -> jax.Array:
        # Deterministic stand-in for np.random.randint(6).
        return jax.random.randint(key, (), 0, 6, dtype=jnp.int32)

    def forward(self, V: jax.Array, Colors: jax.Array, key: jax.Array):
        perm_idx = self.get_params(key)
        perm = jnp.take(self.permutations, perm_idx, axis=0)  # int32[3]
        # TODO(synk): in a fused training pipeline, prefer jnp.take(Colors, perm, axis=1)
        # (or folding the permutation into the next op's weight layout) so XLA makes the
        # swap free; the Pallas copy is only worth it when a materialized permuted
        # buffer is genuinely required — the wrapper's escape hatch handles tiny inputs.
        Colors = channel_swap(Colors, perm)
        return (V, Colors)


if __name__ == "__main__":
    key = jax.random.PRNGKey(0)
    k_v, k_c1, k_c2, k_perm = jax.random.split(key, 4)

    module = ChannelSwap()

    # V is arbitrary side data (passed through untouched).
    V = jax.random.normal(k_v, (2, 8, 16), dtype=jnp.float32)

    # --- Case 1: tiny Colors -> escape hatch (fused XLA gather, no Pallas launch).
    Colors_small = jax.random.normal(k_c1, (2, 3, 16, 16), dtype=jnp.float32)
    V_out, Cs_out = module.forward(V, Colors_small, k_perm)
    V_out = jax.block_until_ready(V_out)
    Cs_out = jax.block_until_ready(Cs_out)
    perm_idx = module.get_params(k_perm)
    perm_fwd = jnp.take(PERMUTATIONS, perm_idx, axis=0)
    assert jnp.array_equal(Cs_out, jnp.take(Colors_small, perm_fwd, axis=1)), \
        "small-path channel swap mismatch"
    assert jnp.array_equal(V_out, V), "V must pass through unchanged"

    # --- Case 2: larger Colors -> Pallas pure-DMA path with multiple
    # descriptors per channel (min_sub_bytes lowered so the split plan kicks
    # in at this test size).  Check all 6 permutations bit-exactly.
    Colors_big = jax.random.normal(k_c2, (2, 3, 128, 256), dtype=jnp.float32)
    for p in range(6):
        perm = PERMUTATIONS[p]
        out = channel_swap(Colors_big, perm, min_sub_bytes=32 << 10)
        out = jax.block_until_ready(out)
        assert jnp.array_equal(out, jnp.take(Colors_big, perm, axis=1)), \
            f"pallas channel swap mismatch for perm {p}"

    # --- Case 3: module forward on the larger tensor (Pallas path, default plan).
    V_out2, Cb_out = module.forward(V, Colors_big, k_perm)
    Cb_out = jax.block_until_ready(Cb_out)
    assert jnp.array_equal(Cb_out, jnp.take(Colors_big, perm_fwd, axis=1)), \
        "forward (pallas path) channel swap mismatch"
    assert jnp.array_equal(V_out2, V), "V must pass through unchanged"

    print("KERNEL_OK")
</pallas_src>

<mosaic_0001>
module attributes {stable_mosaic.version = 11 : i64} {
  func.func @kernel(%arg0: i32, %arg1: memref<3xi32, #tpu.memory_space<smem>>, %arg2: memref<2x3x128x256xf32, #tpu.memory_space<any>>, %arg3: memref<2x3x128x256xf32, #tpu.memory_space<any>>, %arg4: memref<3x4x!tpu.dma_semaphore, #tpu.memory_space<semaphore_mem>>) attributes {dimension_semantics = [#tpu.dimension_semantics<parallel>], iteration_bounds = array<i64: 2>, scalar_prefetch = 1 : i64, scratch_operands = 1 : i64, tpu.core_type = #tpu.core_type<tc>, window_params = [{}, {}]} {
    %c0 = arith.constant 0 : index
    %0 = memref.load %arg1[%c0] : memref<3xi32, #tpu.memory_space<smem>>
    %c4_i32 = arith.constant 4 : i32
    %1 = arith.muli %arg0, %c4_i32 : i32
    %c0_i32 = arith.constant 0 : i32
    %2 = arith.addi %1, %c0_i32 : i32
    %c16_i32 = arith.constant 16 : i32
    %3 = arith.muli %2, %c16_i32 : i32
    %c0_i32_0 = arith.constant 0 : i32
    %c0_i32_1 = arith.constant 0 : i32
    %c0_i32_2 = arith.constant 0 : i32
    %c0_i32_3 = arith.constant 0 : i32
    %4 = tpu.memref_slice %arg2[%c0_i32_2, %0, %3, %c0_i32_3] : memref<2x3x128x256xf32, #tpu.memory_space<any>> -> memref<2x1x16x256xf32, #tpu.memory_space<any>>
    %c0_i32_4 = arith.constant 0 : i32
    %c0_i32_5 = arith.constant 0 : i32
    %c0_i32_6 = arith.constant 0 : i32
    %5 = tpu.memref_slice %arg3[%c0_i32_4, %c0_i32_5, %3, %c0_i32_6] : memref<2x3x128x256xf32, #tpu.memory_space<any>> -> memref<2x1x16x256xf32, #tpu.memory_space<any>>
    %6 = tpu.memref_slice %arg4[%c0_i32_0, %c0_i32_1] : memref<3x4x!tpu.dma_semaphore, #tpu.memory_space<semaphore_mem>> -> memref<1x1x!tpu.dma_semaphore, #tpu.memory_space<semaphore_mem>>
    %7 = tpu.memref_squeeze %6 : memref<1x1x!tpu.dma_semaphore, #tpu.memory_space<semaphore_mem>> -> memref<!tpu.dma_semaphore, #tpu.memory_space<semaphore_mem>>
    tpu.enqueue_dma source(%4 : memref<2x1x16x256xf32, #tpu.memory_space<any>>) target(%5 : memref<2x1x16x256xf32, #tpu.memory_space<any>>) target_semaphore(%7 : memref<!tpu.dma_semaphore, #tpu.memory_space<semaphore_mem>>)
    %c4_i32_7 = arith.constant 4 : i32
    %8 = arith.muli %arg0, %c4_i32_7 : i32
    %c1_i32 = arith.constant 1 : i32
    %9 = arith.addi %8, %c1_i32 : i32
    %c16_i32_8 = arith.constant 16 : i32
    %10 = arith.muli %9, %c16_i32_8 : i32
    %c0_i32_9 = arith.constant 0 : i32
    %c1_i32_10 = arith.constant 1 : i32
    %c0_i32_11 = arith.constant 0 : i32
    %c0_i32_12 = arith.constant 0 : i32
    %11 = tpu.memref_slice %arg2[%c0_i32_11, %0, %10, %c0_i32_12] : memref<2x3x128x256xf32, #tpu.memory_space<any>> -> memref<2x1x16x256xf32, #tpu.memory_space<any>>
    %c0_i32_13 = arith.constant 0 : i32
    %c0_i32_14 = arith.constant 0 : i32
    %c0_i32_15 = arith.constant 0 : i32
    %12 = tpu.memref_slice %arg3[%c0_i32_13, %c0_i32_14, %10, %c0_i32_15] : memref<2x3x128x256xf32, #tpu.memory_space<any>> -> memref<2x1x16x256xf32, #tpu.memory_space<any>>
    %13 = tpu.memref_slice %arg4[%c0_i32_9, %c1_i32_10] : memref<3x4x!tpu.dma_semaphore, #tpu.memory_space<semaphore_mem>> -> memref<1x1x!tpu.dma_semaphore, #tpu.memory_space<semaphore_mem>>
    %14 = tpu.memref_squeeze %13 : memref<1x1x!tpu.dma_semaphore, #tpu.memory_space<semaphore_mem>> -> memref<!tpu.dma_semaphore, #tpu.memory_space<semaphore_mem>>
    tpu.enqueue_dma source(%11 : memref<2x1x16x256xf32, #tpu.memory_space<any>>) target(%12 : memref<2x1x16x256xf32, #tpu.memory_space<any>>) target_semaphore(%14 : memref<!tpu.dma_semaphore, #tpu.memory_space<semaphore_mem>>)
    %c4_i32_16 = arith.constant 4 : i32
    %15 = arith.muli %arg0, %c4_i32_16 : i32
    %c2_i32 = arith.constant 2 : i32
    %16 = arith.addi %15, %c2_i32 : i32
    %c16_i32_17 = arith.constant 16 : i32
    %17 = arith.muli %16, %c16_i32_17 : i32
    %c0_i32_18 = arith.constant 0 : i32
    %c2_i32_19 = arith.constant 2 : i32
    %c0_i32_20 = arith.constant 0 : i32
    %c0_i32_21 = arith.constant 0 : i32
    %18 = tpu.memref_slice %arg2[%c0_i32_20, %0, %17, %c0_i32_21] : memref<2x3x128x256xf32, #tpu.memory_space<any>> -> memref<2x1x16x256xf32, #tpu.memory_space<any>>
    %c0_i32_22 = arith.constant 0 : i32
    %c0_i32_23 = arith.constant 0 : i32
    %c0_i32_24 = arith.constant 0 : i32
    %19 = tpu.memref_slice %arg3[%c0_i32_22, %c0_i32_23, %17, %c0_i32_24] : memref<2x3x128x256xf32, #tpu.memory_space<any>> -> memref<2x1x16x256xf32, #tpu.memory_space<any>>
    %20 = tpu.memref_slice %arg4[%c0_i32_18, %c2_i32_19] : memref<3x4x!tpu.dma_semaphore, #tpu.memory_space<semaphore_mem>> -> memref<1x1x!tpu.dma_semaphore, #tpu.memory_space<semaphore_mem>>
    %21 = tpu.memref_squeeze %20 : memref<1x1x!tpu.dma_semaphore, #tpu.memory_space<semaphore_mem>> -> memref<!tpu.dma_semaphore, #tpu.memory_space<semaphore_mem>>
    tpu.enqueue_dma source(%18 : memref<2x1x16x256xf32, #tpu.memory_space<any>>) target(%19 : memref<2x1x16x256xf32, #tpu.memory_space<any>>) target_semaphore(%21 : memref<!tpu.dma_semaphore, #tpu.memory_space<semaphore_mem>>)
    %c4_i32_25 = arith.constant 4 : i32
    %22 = arith.muli %arg0, %c4_i32_25 : i32
    %c3_i32 = arith.constant 3 : i32
    %23 = arith.addi %22, %c3_i32 : i32
    %c16_i32_26 = arith.constant 16 : i32
    %24 = arith.muli %23, %c16_i32_26 : i32
    %c0_i32_27 = arith.constant 0 : i32
    %c3_i32_28 = arith.constant 3 : i32
    %c0_i32_29 = arith.constant 0 : i32
    %c0_i32_30 = arith.constant 0 : i32
    %25 = tpu.memref_slice %arg2[%c0_i32_29, %0, %24, %c0_i32_30] : memref<2x3x128x256xf32, #tpu.memory_space<any>> -> memref<2x1x16x256xf32, #tpu.memory_space<any>>
    %c0_i32_31 = arith.constant 0 : i32
    %c0_i32_32 = arith.constant 0 : i32
    %c0_i32_33 = arith.constant 0 : i32
    %26 = tpu.memref_slice %arg3[%c0_i32_31, %c0_i32_32, %24, %c0_i32_33] : memref<2x3x128x256xf32, #tpu.memory_space<any>> -> memref<2x1x16x256xf32, #tpu.memory_space<any>>
    %27 = tpu.memref_slice %arg4[%c0_i32_27, %c3_i32_28] : memref<3x4x!tpu.dma_semaphore, #tpu.memory_space<semaphore_mem>> -> memref<1x1x!tpu.dma_semaphore, #tpu.memory_space<semaphore_mem>>
    %28 = tpu.memref_squeeze %27 : memref<1x1x!tpu.dma_semaphore, #tpu.memory_space<semaphore_mem>> -> memref<!tpu.dma_semaphore, #tpu.memory_space<semaphore_mem>>
    tpu.enqueue_dma source(%25 : memref<2x1x16x256xf32, #tpu.memory_space<any>>) target(%26 : memref<2x1x16x256xf32, #tpu.memory_space<any>>) target_semaphore(%28 : memref<!tpu.dma_semaphore, #tpu.memory_space<semaphore_mem>>)
    %c1 = arith.constant 1 : index
    %29 = memref.load %arg1[%c1] : memref<3xi32, #tpu.memory_space<smem>>
    %c4_i32_34 = arith.constant 4 : i32
    %30 = arith.muli %arg0, %c4_i32_34 : i32
    %c0_i32_35 = arith.constant 0 : i32
    %31 = arith.addi %30, %c0_i32_35 : i32
    %c16_i32_36 = arith.constant 16 : i32
    %32 = arith.muli %31, %c16_i32_36 : i32
    %c1_i32_37 = arith.constant 1 : i32
    %c0_i32_38 = arith.constant 0 : i32
    %c0_i32_39 = arith.constant 0 : i32
    %c0_i32_40 = arith.constant 0 : i32
    %33 = tpu.memref_slice %arg2[%c0_i32_39, %29, %32, %c0_i32_40] : memref<2x3x128x256xf32, #tpu.memory_space<any>> -> memref<2x1x16x256xf32, #tpu.memory_space<any>>
    %c0_i32_41 = arith.constant 0 : i32
    %c1_i32_42 = arith.constant 1 : i32
    %c0_i32_43 = arith.constant 0 : i32
    %34 = tpu.memref_slice %arg3[%c0_i32_41, %c1_i32_42, %32, %c0_i32_43] : memref<2x3x128x256xf32, #tpu.memory_space<any>> -> memref<2x1x16x256xf32, #tpu.memory_space<any>>
    %35 = tpu.memref_slice %arg4[%c1_i32_37, %c0_i32_38] : memref<3x4x!tpu.dma_semaphore, #tpu.memory_space<semaphore_mem>> -> memref<1x1x!tpu.dma_semaphore, #tpu.memory_space<semaphore_mem>>
    %36 = tpu.memref_squeeze %35 : memref<1x1x!tpu.dma_semaphore, #tpu.memory_space<semaphore_mem>> -> memref<!tpu.dma_semaphore, #tpu.memory_space<semaphore_mem>>
    tpu.enqueue_dma source(%33 : memref<2x1x16x256xf32, #tpu.memory_space<any>>) target(%34 : memref<2x1x16x256xf32, #tpu.memory_space<any>>) target_semaphore(%36 : memref<!tpu.dma_semaphore, #tpu.memory_space<semaphore_mem>>)
    %c4_i32_44 = arith.constant 4 : i32
    %37 = arith.muli %arg0, %c4_i32_44 : i32
    %c1_i32_45 = arith.constant 1 : i32
    %38 = arith.addi %37, %c1_i32_45 : i32
    %c16_i32_46 = arith.constant 16 : i32
    %39 = arith.muli %38, %c16_i32_46 : i32
    %c1_i32_47 = arith.constant 1 : i32
    %c1_i32_48 = arith.constant 1 : i32
    %c0_i32_49 = arith.constant 0 : i32
    %c0_i32_50 = arith.constant 0 : i32
    %40 = tpu.memref_slice %arg2[%c0_i32_49, %29, %39, %c0_i32_50] : memref<2x3x128x256xf32, #tpu.memory_space<any>> -> memref<2x1x16x256xf32, #tpu.memory_space<any>>
    %c0_i32_51 = arith.constant 0 : i32
    %c1_i32_52 = arith.constant 1 : i32
    %c0_i32_53 = arith.constant 0 : i32
    %41 = tpu.memref_slice %arg3[%c0_i32_51, %c1_i32_52, %39, %c0_i32_53] : memref<2x3x128x256xf32, #tpu.memory_space<any>> -> memref<2x1x16x256xf32, #tpu.memory_space<any>>
    %42 = tpu.memref_slice %arg4[%c1_i32_47, %c1_i32_48] : memref<3x4x!tpu.dma_semaphore, #tpu.memory_space<semaphore_mem>> -> memref<1x1x!tpu.dma_semaphore, #tpu.memory_space<semaphore_mem>>
    %43 = tpu.memref_squeeze %42 : memref<1x1x!tpu.dma_semaphore, #tpu.memory_space<semaphore_mem>> -> memref<!tpu.dma_semaphore, #tpu.memory_space<semaphore_mem>>
    tpu.enqueue_dma source(%40 : memref<2x1x16x256xf32, #tpu.memory_space<any>>) target(%41 : memref<2x1x16x256xf32, #tpu.memory_space<any>>) target_semaphore(%43 : memref<!tpu.dma_semaphore, #tpu.memory_space<semaphore_mem>>)
    %c4_i32_54 = arith.constant 4 : i32
    %44 = arith.muli %arg0, %c4_i32_54 : i32
    %c2_i32_55 = arith.constant 2 : i32
    %45 = arith.addi %44, %c2_i32_55 : i32
    %c16_i32_56 = arith.constant 16 : i32
    %46 = arith.muli %45, %c16_i32_56 : i32
    %c1_i32_57 = arith.constant 1 : i32
    %c2_i32_58 = arith.constant 2 : i32
    %c0_i32_59 = arith.constant 0 : i32
    %c0_i32_60 = arith.constant 0 : i32
    %47 = tpu.memref_slice %arg2[%c0_i32_59, %29, %46, %c0_i32_60] : memref<2x3x128x256xf32, #tpu.memory_space<any>> -> memref<2x1x16x256xf32, #tpu.memory_space<any>>
    %c0_i32_61 = arith.constant 0 : i32
    %c1_i32_62 = arith.constant 1 : i32
    %c0_i32_63 = arith.constant 0 : i32
    %48 = tpu.memref_slice %arg3[%c0_i32_61, %c1_i32_62, %46, %c0_i32_63] : memref<2x3x128x256xf32, #tpu.memory_space<any>> -> memref<2x1x16x256xf32, #tpu.memory_space<any>>
    %49 = tpu.memref_slice %arg4[%c1_i32_57, %c2_i32_58] : memref<3x4x!tpu.dma_semaphore, #tpu.memory_space<semaphore_mem>> -> memref<1x1x!tpu.dma_semaphore, #tpu.memory_space<semaphore_mem>>
    %50 = tpu.memref_squeeze %49 : memref<1x1x!tpu.dma_semaphore, #tpu.memory_space<semaphore_mem>> -> memref<!tpu.dma_semaphore, #tpu.memory_space<semaphore_mem>>
    tpu.enqueue_dma source(%47 : memref<2x1x16x256xf32, #tpu.memory_space<any>>) target(%48 : memref<2x1x16x256xf32, #tpu.memory_space<any>>) target_semaphore(%50 : memref<!tpu.dma_semaphore, #tpu.memory_space<semaphore_mem>>)
    %c4_i32_64 = arith.constant 4 : i32
    %51 = arith.muli %arg0, %c4_i32_64 : i32
    %c3_i32_65 = arith.constant 3 : i32
    %52 = arith.addi %51, %c3_i32_65 : i32
    %c16_i32_66 = arith.constant 16 : i32
    %53 = arith.muli %52, %c16_i32_66 : i32
    %c1_i32_67 = arith.constant 1 : i32
    %c3_i32_68 = arith.constant 3 : i32
    %c0_i32_69 = arith.constant 0 : i32
    %c0_i32_70 = arith.constant 0 : i32
    %54 = tpu.memref_slice %arg2[%c0_i32_69, %29, %53, %c0_i32_70] : memref<2x3x128x256xf32, #tpu.memory_space<any>> -> memref<2x1x16x256xf32, #tpu.memory_space<any>>
    %c0_i32_71 = arith.constant 0 : i32
    %c1_i32_72 = arith.constant 1 : i32
    %c0_i32_73 = arith.constant 0 : i32
    %55 = tpu.memref_slice %arg3[%c0_i32_71, %c1_i32_72, %53, %c0_i32_73] : memref<2x3x128x256xf32, #tpu.memory_space<any>> -> memref<2x1x16x256xf32, #tpu.memory_space<any>>
    %56 = tpu.memref_slice %arg4[%c1_i32_67, %c3_i32_68] : memref<3x4x!tpu.dma_semaphore, #tpu.memory_space<semaphore_mem>> -> memref<1x1x!tpu.dma_semaphore, #tpu.memory_space<semaphore_mem>>
    %57 = tpu.memref_squeeze %56 : memref<1x1x!tpu.dma_semaphore, #tpu.memory_space<semaphore_mem>> -> memref<!tpu.dma_semaphore, #tpu.memory_space<semaphore_mem>>
    tpu.enqueue_dma source(%54 : memref<2x1x16x256xf32, #tpu.memory_space<any>>) target(%55 : memref<2x1x16x256xf32, #tpu.memory_space<any>>) target_semaphore(%57 : memref<!tpu.dma_semaphore, #tpu.memory_space<semaphore_mem>>)
    %c2 = arith.constant 2 : index
    %58 = memref.load %arg1[%c2] : memref<3xi32, #tpu.memory_space<smem>>
    %c4_i32_74 = arith.constant 4 : i32
    %59 = arith.muli %arg0, %c4_i32_74 : i32
    %c0_i32_75 = arith.constant 0 : i32
    %60 = arith.addi %59, %c0_i32_75 : i32
    %c16_i32_76 = arith.constant 16 : i32
    %61 = arith.muli %60, %c16_i32_76 : i32
    %c2_i32_77 = arith.constant 2 : i32
    %c0_i32_78 = arith.constant 0 : i32
    %c0_i32_79 = arith.constant 0 : i32
    %c0_i32_80 = arith.constant 0 : i32
    %62 = tpu.memref_slice %arg2[%c0_i32_79, %58, %61, %c0_i32_80] : memref<2x3x128x256xf32, #tpu.memory_space<any>> -> memref<2x1x16x256xf32, #tpu.memory_space<any>>
    %c0_i32_81 = arith.constant 0 : i32
    %c2_i32_82 = arith.constant 2 : i32
    %c0_i32_83 = arith.constant 0 : i32
    %63 = tpu.memref_slice %arg3[%c0_i32_81, %c2_i32_82, %61, %c0_i32_83] : memref<2x3x128x256xf32, #tpu.memory_space<any>> -> memref<2x1x16x256xf32, #tpu.memory_space<any>>
    %64 = tpu.memref_slice %arg4[%c2_i32_77, %c0_i32_78] : memref<3x4x!tpu.dma_semaphore, #tpu.memory_space<semaphore_mem>> -> memref<1x1x!tpu.dma_semaphore, #tpu.memory_space<semaphore_mem>>
    %65 = tpu.memref_squeeze %64 : memref<1x1x!tpu.dma_semaphore, #tpu.memory_space<semaphore_mem>> -> memref<!tpu.dma_semaphore, #tpu.memory_space<semaphore_mem>>
    tpu.enqueue_dma source(%62 : memref<2x1x16x256xf32, #tpu.memory_space<any>>) target(%63 : memref<2x1x16x256xf32, #tpu.memory_space<any>>) target_semaphore(%65 : memref<!tpu.dma_semaphore, #tpu.memory_space<semaphore_mem>>)
    %c4_i32_84 = arith.constant 4 : i32
    %66 = arith.muli %arg0, %c4_i32_84 : i32
    %c1_i32_85 = arith.constant 1 : i32
    %67 = arith.addi %66, %c1_i32_85 : i32
    %c16_i32_86 = arith.constant 16 : i32
    %68 = arith.muli %67, %c16_i32_86 : i32
    %c2_i32_87 = arith.constant 2 : i32
    %c1_i32_88 = arith.constant 1 : i32
    %c0_i32_89 = arith.constant 0 : i32
    %c0_i32_90 = arith.constant 0 : i32
    %69 = tpu.memref_slice %arg2[%c0_i32_89, %58, %68, %c0_i32_90] : memref<2x3x128x256xf32, #tpu.memory_space<any>> -> memref<2x1x16x256xf32, #tpu.memory_space<any>>
    %c0_i32_91 = arith.constant 0 : i32
    %c2_i32_92 = arith.constant 2 : i32
    %c0_i32_93 = arith.constant 0 : i32
    %70 = tpu.memref_slice %arg3[%c0_i32_91, %c2_i32_92, %68, %c0_i32_93] : memref<2x3x128x256xf32, #tpu.memory_space<any>> -> memref<2x1x16x256xf32, #tpu.memory_space<any>>
    %71 = tpu.memref_slice %arg4[%c2_i32_87, %c1_i32_88] : memref<3x4x!tpu.dma_semaphore, #tpu.memory_space<semaphore_mem>> -> memref<1x1x!tpu.dma_semaphore, #tpu.memory_space<semaphore_mem>>
    %72 = tpu.memref_squeeze %71 : memref<1x1x!tpu.dma_semaphore, #tpu.memory_space<semaphore_mem>> -> memref<!tpu.dma_semaphore, #tpu.memory_space<semaphore_mem>>
    tpu.enqueue_dma source(%69 : memref<2x1x16x256xf32, #tpu.memory_space<any>>) target(%70 : memref<2x1x16x256xf32, #tpu.memory_space<any>>) target_semaphore(%72 : memref<!tpu.dma_semaphore, #tpu.memory_space<semaphore_mem>>)
    %c4_i32_94 = arith.constant 4 : i32
    %73 = arith.muli %arg0, %c4_i32_94 : i32
    %c2_i32_95 = arith.constant 2 : i32
    %74 = arith.addi %73, %c2_i32_95 : i32
    %c16_i32_96 = arith.constant 16 : i32
    %75 = arith.muli %74, %c16_i32_96 : i32
    %c2_i32_97 = arith.constant 2 : i32
    %c2_i32_98 = arith.constant 2 : i32
    %c0_i32_99 = arith.constant 0 : i32
    %c0_i32_100 = arith.constant 0 : i32
    %76 = tpu.memref_slice %arg2[%c0_i32_99, %58, %75, %c0_i32_100] : memref<2x3x128x256xf32, #tpu.memory_space<any>> -> memref<2x1x16x256xf32, #tpu.memory_space<any>>
    %c0_i32_101 = arith.constant 0 : i32
    %c2_i32_102 = arith.constant 2 : i32
    %c0_i32_103 = arith.constant 0 : i32
    %77 = tpu.memref_slice %arg3[%c0_i32_101, %c2_i32_102, %75, %c0_i32_103] : memref<2x3x128x256xf32, #tpu.memory_space<any>> -> memref<2x1x16x256xf32, #tpu.memory_space<any>>
    %78 = tpu.memref_slice %arg4[%c2_i32_97, %c2_i32_98] : memref<3x4x!tpu.dma_semaphore, #tpu.memory_space<semaphore_mem>> -> memref<1x1x!tpu.dma_semaphore, #tpu.memory_space<semaphore_mem>>
    %79 = tpu.memref_squeeze %78 : memref<1x1x!tpu.dma_semaphore, #tpu.memory_space<semaphore_mem>> -> memref<!tpu.dma_semaphore, #tpu.memory_space<semaphore_mem>>
    tpu.enqueue_dma source(%76 : memref<2x1x16x256xf32, #tpu.memory_space<any>>) target(%77 : memref<2x1x16x256xf32, #tpu.memory_space<any>>) target_semaphore(%79 : memref<!tpu.dma_semaphore, #tpu.memory_space<semaphore_mem>>)
    %c4_i32_104 = arith.constant 4 : i32
    %80 = arith.muli %arg0, %c4_i32_104 : i32
    %c3_i32_105 = arith.constant 3 : i32
    %81 = arith.addi %80, %c3_i32_105 : i32
    %c16_i32_106 = arith.constant 16 : i32
    %82 = arith.muli %81, %c16_i32_106 : i32
    %c2_i32_107 = arith.constant 2 : i32
    %c3_i32_108 = arith.constant 3 : i32
    %c0_i32_109 = arith.constant 0 : i32
    %c0_i32_110 = arith.constant 0 : i32
    %83 = tpu.memref_slice %arg2[%c0_i32_109, %58, %82, %c0_i32_110] : memref<2x3x128x256xf32, #tpu.memory_space<any>> -> memref<2x1x16x256xf32, #tpu.memory_space<any>>
    %c0_i32_111 = arith.constant 0 : i32
    %c2_i32_112 = arith.constant 2 : i32
    %c0_i32_113 = arith.constant 0 : i32
    %84 = tpu.memref_slice %arg3[%c0_i32_111, %c2_i32_112, %82, %c0_i32_113] : memref<2x3x128x256xf32, #tpu.memory_space<any>> -> memref<2x1x16x256xf32, #tpu.memory_space<any>>
    %85 = tpu.memref_slice %arg4[%c2_i32_107, %c3_i32_108] : memref<3x4x!tpu.dma_semaphore, #tpu.memory_space<semaphore_mem>> -> memref<1x1x!tpu.dma_semaphore, #tpu.memory_space<semaphore_mem>>
    %86 = tpu.memref_squeeze %85 : memref<1x1x!tpu.dma_semaphore, #tpu.memory_space<semaphore_mem>> -> memref<!tpu.dma_semaphore, #tpu.memory_space<semaphore_mem>>
    tpu.enqueue_dma source(%83 : memref<2x1x16x256xf32, #tpu.memory_space<any>>) target(%84 : memref<2x1x16x256xf32, #tpu.memory_space<any>>) target_semaphore(%86 : memref<!tpu.dma_semaphore, #tpu.memory_space<semaphore_mem>>)
    %c0_i32_114 = arith.constant 0 : i32
    %c0_i32_115 = arith.constant 0 : i32
    %c0_i32_116 = arith.constant 0 : i32
    %c0_i32_117 = arith.constant 0 : i32
    %87 = tpu.memref_slice %arg2[%c0_i32_116, %0, %3, %c0_i32_117] : memref<2x3x128x256xf32, #tpu.memory_space<any>> -> memref<2x1x16x256xf32, #tpu.memory_space<any>>
    %c0_i32_118 = arith.constant 0 : i32
    %c0_i32_119 = arith.constant 0 : i32
    %c0_i32_120 = arith.constant 0 : i32
    %88 = tpu.memref_slice %arg3[%c0_i32_118, %c0_i32_119, %3, %c0_i32_120] : memref<2x3x128x256xf32, #tpu.memory_space<any>> -> memref<2x1x16x256xf32, #tpu.memory_space<any>>
    %89 = tpu.memref_slice %arg4[%c0_i32_114, %c0_i32_115] : memref<3x4x!tpu.dma_semaphore, #tpu.memory_space<semaphore_mem>> -> memref<1x1x!tpu.dma_semaphore, #tpu.memory_space<semaphore_mem>>
    %90 = tpu.memref_squeeze %89 : memref<1x1x!tpu.dma_semaphore, #tpu.memory_space<semaphore_mem>> -> memref<!tpu.dma_semaphore, #tpu.memory_space<semaphore_mem>>
    tpu.wait_dma2 semaphore(%90 : memref<!tpu.dma_semaphore, #tpu.memory_space<semaphore_mem>>) src(%87 : memref<2x1x16x256xf32, #tpu.memory_space<any>>) dst(%88 : memref<2x1x16x256xf32, #tpu.memory_space<any>>)
    %c0_i32_121 = arith.constant 0 : i32
    %c1_i32_122 = arith.constant 1 : i32
    %c0_i32_123 = arith.constant 0 : i32
    %c0_i32_124 = arith.constant 0 : i32
    %91 = tpu.memref_slice %arg2[%c0_i32_123, %0, %10, %c0_i32_124] : memref<2x3x128x256xf32, #tpu.memory_space<any>> -> memref<2x1x16x256xf32, #tpu.memory_space<any>>
    %c0_i32_125 = arith.constant 0 : i32
    %c0_i32_126 = arith.constant 0 : i32
    %c0_i32_127 = arith.constant 0 : i32
    %92 = tpu.memref_slice %arg3[%c0_i32_125, %c0_i32_126, %10, %c0_i32_127] : memref<2x3x128x256xf32, #tpu.memory_space<any>> -> memref<2x1x16x256xf32, #tpu.memory_space<any>>
    %93 = tpu.memref_slice %arg4[%c0_i32_121, %c1_i32_122] : memref<3x4x!tpu.dma_semaphore, #tpu.memory_space<semaphore_mem>> -> memref<1x1x!tpu.dma_semaphore, #tpu.memory_space<semaphore_mem>>
    %94 = tpu.memref_squeeze %93 : memref<1x1x!tpu.dma_semaphore, #tpu.memory_space<semaphore_mem>> -> memref<!tpu.dma_semaphore, #tpu.memory_space<semaphore_mem>>
    tpu.wait_dma2 semaphore(%94 : memref<!tpu.dma_semaphore, #tpu.memory_space<semaphore_mem>>) src(%91 : memref<2x1x16x256xf32, #tpu.memory_space<any>>) dst(%92 : memref<2x1x16x256xf32, #tpu.memory_space<any>>)
    %c0_i32_128 = arith.constant 0 : i32
    %c2_i32_129 = arith.constant 2 : i32
    %c0_i32_130 = arith.constant 0 : i32
    %c0_i32_131 = arith.constant 0 : i32
    %95 = tpu.memref_slice %arg2[%c0_i32_130, %0, %17, %c0_i32_131] : memref<2x3x128x256xf32, #tpu.memory_space<any>> -> memref<2x1x16x256xf32, #tpu.memory_space<any>>
    %c0_i32_132 = arith.constant 0 : i32
    %c0_i32_133 = arith.constant 0 : i32
    %c0_i32_134 = arith.constant 0 : i32
    %96 = tpu.memref_slice %arg3[%c0_i32_132, %c0_i32_133, %17, %c0_i32_134] : memref<2x3x128x256xf32, #tpu.memory_space<any>> -> memref<2x1x16x256xf32, #tpu.memory_space<any>>
    %97 = tpu.memref_slice %arg4[%c0_i32_128, %c2_i32_129] : memref<3x4x!tpu.dma_semaphore, #tpu.memory_space<semaphore_mem>> -> memref<1x1x!tpu.dma_semaphore, #tpu.memory_space<semaphore_mem>>
    %98 = tpu.memref_squeeze %97 : memref<1x1x!tpu.dma_semaphore, #tpu.memory_space<semaphore_mem>> -> memref<!tpu.dma_semaphore, #tpu.memory_space<semaphore_mem>>
    tpu.wait_dma2 semaphore(%98 : memref<!tpu.dma_semaphore, #tpu.memory_space<semaphore_mem>>) src(%95 : memref<2x1x16x256xf32, #tpu.memory_space<any>>) dst(%96 : memref<2x1x16x256xf32, #tpu.memory_space<any>>)
    %c0_i32_135 = arith.constant 0 : i32
    %c3_i32_136 = arith.constant 3 : i32
    %c0_i32_137 = arith.constant 0 : i32
    %c0_i32_138 = arith.constant 0 : i32
    %99 = tpu.memref_slice %arg2[%c0_i32_137, %0, %24, %c0_i32_138] : memref<2x3x128x256xf32, #tpu.memory_space<any>> -> memref<2x1x16x256xf32, #tpu.memory_space<any>>
    %c0_i32_139 = arith.constant 0 : i32
    %c0_i32_140 = arith.constant 0 : i32
    %c0_i32_141 = arith.constant 0 : i32
    %100 = tpu.memref_slice %arg3[%c0_i32_139, %c0_i32_140, %24, %c0_i32_141] : memref<2x3x128x256xf32, #tpu.memory_space<any>> -> memref<2x1x16x256xf32, #tpu.memory_space<any>>
    %101 = tpu.memref_slice %arg4[%c0_i32_135, %c3_i32_136] : memref<3x4x!tpu.dma_semaphore, #tpu.memory_space<semaphore_mem>> -> memref<1x1x!tpu.dma_semaphore, #tpu.memory_space<semaphore_mem>>
    %102 = tpu.memref_squeeze %101 : memref<1x1x!tpu.dma_semaphore, #tpu.memory_space<semaphore_mem>> -> memref<!tpu.dma_semaphore, #tpu.memory_space<semaphore_mem>>
    tpu.wait_dma2 semaphore(%102 : memref<!tpu.dma_semaphore, #tpu.memory_space<semaphore_mem>>) src(%99 : memref<2x1x16x256xf32, #tpu.memory_space<any>>) dst(%100 : memref<2x1x16x256xf32, #tpu.memory_space<any>>)
    %c1_i32_142 = arith.constant 1 : i32
    %c0_i32_143 = arith.constant 0 : i32
    %c0_i32_144 = arith.constant 0 : i32
    %c0_i32_145 = arith.constant 0 : i32
    %103 = tpu.memref_slice %arg2[%c0_i32_144, %29, %32, %c0_i32_145] : memref<2x3x128x256xf32, #tpu.memory_space<any>> -> memref<2x1x16x256xf32, #tpu.memory_space<any>>
    %c0_i32_146 = arith.constant 0 : i32
    %c1_i32_147 = arith.constant 1 : i32
    %c0_i32_148 = arith.constant 0 : i32
    %104 = tpu.memref_slice %arg3[%c0_i32_146, %c1_i32_147, %32, %c0_i32_148] : memref<2x3x128x256xf32, #tpu.memory_space<any>> -> memref<2x1x16x256xf32, #tpu.memory_space<any>>
    %105 = tpu.memref_slice %arg4[%c1_i32_142, %c0_i32_143] : memref<3x4x!tpu.dma_semaphore, #tpu.memory_space<semaphore_mem>> -> memref<1x1x!tpu.dma_semaphore, #tpu.memory_space<semaphore_mem>>
    %106 = tpu.memref_squeeze %105 : memref<1x1x!tpu.dma_semaphore, #tpu.memory_space<semaphore_mem>> -> memref<!tpu.dma_semaphore, #tpu.memory_space<semaphore_mem>>
    tpu.wait_dma2 semaphore(%106 : memref<!tpu.dma_semaphore, #tpu.memory_space<semaphore_mem>>) src(%103 : memref<2x1x16x256xf32, #tpu.memory_space<any>>) dst(%104 : memref<2x1x16x256xf32, #tpu.memory_space<any>>)
    %c1_i32_149 = arith.constant 1 : i32
    %c1_i32_150 = arith.constant 1 : i32
    %c0_i32_151 = arith.constant 0 : i32
    %c0_i32_152 = arith.constant 0 : i32
    %107 = tpu.memref_slice %arg2[%c0_i32_151, %29, %39, %c0_i32_152] : memref<2x3x128x256xf32, #tpu.memory_space<any>> -> memref<2x1x16x256xf32, #tpu.memory_space<any>>
    %c0_i32_153 = arith.constant 0 : i32
    %c1_i32_154 = arith.constant 1 : i32
    %c0_i32_155 = arith.constant 0 : i32
    %108 = tpu.memref_slice %arg3[%c0_i32_153, %c1_i32_154, %39, %c0_i32_155] : memref<2x3x128x256xf32, #tpu.memory_space<any>> -> memref<2x1x16x256xf32, #tpu.memory_space<any>>
    %109 = tpu.memref_slice %arg4[%c1_i32_149, %c1_i32_150] : memref<3x4x!tpu.dma_semaphore, #tpu.memory_space<semaphore_mem>> -> memref<1x1x!tpu.dma_semaphore, #tpu.memory_space<semaphore_mem>>
    %110 = tpu.memref_squeeze %109 : memref<1x1x!tpu.dma_semaphore, #tpu.memory_space<semaphore_mem>> -> memref<!tpu.dma_semaphore, #tpu.memory_space<semaphore_mem>>
    tpu.wait_dma2 semaphore(%110 : memref<!tpu.dma_semaphore, #tpu.memory_space<semaphore_mem>>) src(%107 : memref<2x1x16x256xf32, #tpu.memory_space<any>>) dst(%108 : memref<2x1x16x256xf32, #tpu.memory_space<any>>)
    %c1_i32_156 = arith.constant 1 : i32
    %c2_i32_157 = arith.constant 2 : i32
    %c0_i32_158 = arith.constant 0 : i32
    %c0_i32_159 = arith.constant 0 : i32
    %111 = tpu.memref_slice %arg2[%c0_i32_158, %29, %46, %c0_i32_159] : memref<2x3x128x256xf32, #tpu.memory_space<any>> -> memref<2x1x16x256xf32, #tpu.memory_space<any>>
    %c0_i32_160 = arith.constant 0 : i32
    %c1_i32_161 = arith.constant 1 : i32
    %c0_i32_162 = arith.constant 0 : i32
    %112 = tpu.memref_slice %arg3[%c0_i32_160, %c1_i32_161, %46, %c0_i32_162] : memref<2x3x128x256xf32, #tpu.memory_space<any>> -> memref<2x1x16x256xf32, #tpu.memory_space<any>>
    %113 = tpu.memref_slice %arg4[%c1_i32_156, %c2_i32_157] : memref<3x4x!tpu.dma_semaphore, #tpu.memory_space<semaphore_mem>> -> memref<1x1x!tpu.dma_semaphore, #tpu.memory_space<semaphore_mem>>
    %114 = tpu.memref_squeeze %113 : memref<1x1x!tpu.dma_semaphore, #tpu.memory_space<semaphore_mem>> -> memref<!tpu.dma_semaphore, #tpu.memory_space<semaphore_mem>>
    tpu.wait_dma2 semaphore(%114 : memref<!tpu.dma_semaphore, #tpu.memory_space<semaphore_mem>>) src(%111 : memref<2x1x16x256xf32, #tpu.memory_space<any>>) dst(%112 : memref<2x1x16x256xf32, #tpu.memory_space<any>>)
    %c1_i32_163 = arith.constant 1 : i32
    %c3_i32_164 = arith.constant 3 : i32
    %c0_i32_165 = arith.constant 0 : i32
    %c0_i32_166 = arith.constant 0 : i32
    %115 = tpu.memref_slice %arg2[%c0_i32_165, %29, %53, %c0_i32_166] : memref<2x3x128x256xf32, #tpu.memory_space<any>> -> memref<2x1x16x256xf32, #tpu.memory_space<any>>
    %c0_i32_167 = arith.constant 0 : i32
    %c1_i32_168 = arith.constant 1 : i32
    %c0_i32_169 = arith.constant 0 : i32
    %116 = tpu.memref_slice %arg3[%c0_i32_167, %c1_i32_168, %53, %c0_i32_169] : memref<2x3x128x256xf32, #tpu.memory_space<any>> -> memref<2x1x16x256xf32, #tpu.memory_space<any>>
    %117 = tpu.memref_slice %arg4[%c1_i32_163, %c3_i32_164] : memref<3x4x!tpu.dma_semaphore, #tpu.memory_space<semaphore_mem>> -> memref<1x1x!tpu.dma_semaphore, #tpu.memory_space<semaphore_mem>>
    %118 = tpu.memref_squeeze %117 : memref<1x1x!tpu.dma_semaphore, #tpu.memory_space<semaphore_mem>> -> memref<!tpu.dma_semaphore, #tpu.memory_space<semaphore_mem>>
    tpu.wait_dma2 semaphore(%118 : memref<!tpu.dma_semaphore, #tpu.memory_space<semaphore_mem>>) src(%115 : memref<2x1x16x256xf32, #tpu.memory_space<any>>) dst(%116 : memref<2x1x16x256xf32, #tpu.memory_space<any>>)
    %c2_i32_170 = arith.constant 2 : i32
    %c0_i32_171 = arith.constant 0 : i32
    %c0_i32_172 = arith.constant 0 : i32
    %c0_i32_173 = arith.constant 0 : i32
    %119 = tpu.memref_slice %arg2[%c0_i32_172, %58, %61, %c0_i32_173] : memref<2x3x128x256xf32, #tpu.memory_space<any>> -> memref<2x1x16x256xf32, #tpu.memory_space<any>>
    %c0_i32_174 = arith.constant 0 : i32
    %c2_i32_175 = arith.constant 2 : i32
    %c0_i32_176 = arith.constant 0 : i32
    %120 = tpu.memref_slice %arg3[%c0_i32_174, %c2_i32_175, %61, %c0_i32_176] : memref<2x3x128x256xf32, #tpu.memory_space<any>> -> memref<2x1x16x256xf32, #tpu.memory_space<any>>
    %121 = tpu.memref_slice %arg4[%c2_i32_170, %c0_i32_171] : memref<3x4x!tpu.dma_semaphore, #tpu.memory_space<semaphore_mem>> -> memref<1x1x!tpu.dma_semaphore, #tpu.memory_space<semaphore_mem>>
    %122 = tpu.memref_squeeze %121 : memref<1x1x!tpu.dma_semaphore, #tpu.memory_space<semaphore_mem>> -> memref<!tpu.dma_semaphore, #tpu.memory_space<semaphore_mem>>
    tpu.wait_dma2 semaphore(%122 : memref<!tpu.dma_semaphore, #tpu.memory_space<semaphore_mem>>) src(%119 : memref<2x1x16x256xf32, #tpu.memory_space<any>>) dst(%120 : memref<2x1x16x256xf32, #tpu.memory_space<any>>)
    %c2_i32_177 = arith.constant 2 : i32
    %c1_i32_178 = arith.constant 1 : i32
    %c0_i32_179 = arith.constant 0 : i32
    %c0_i32_180 = arith.constant 0 : i32
    %123 = tpu.memref_slice %arg2[%c0_i32_179, %58, %68, %c0_i32_180] : memref<2x3x128x256xf32, #tpu.memory_space<any>> -> memref<2x1x16x256xf32, #tpu.memory_space<any>>
    %c0_i32_181 = arith.constant 0 : i32
    %c2_i32_182 = arith.constant 2 : i32
    %c0_i32_183 = arith.constant 0 : i32
    %124 = tpu.memref_slice %arg3[%c0_i32_181, %c2_i32_182, %68, %c0_i32_183] : memref<2x3x128x256xf32, #tpu.memory_space<any>> -> memref<2x1x16x256xf32, #tpu.memory_space<any>>
    %125 = tpu.memref_slice %arg4[%c2_i32_177, %c1_i32_178] : memref<3x4x!tpu.dma_semaphore, #tpu.memory_space<semaphore_mem>> -> memref<1x1x!tpu.dma_semaphore, #tpu.memory_space<semaphore_mem>>
    %126 = tpu.memref_squeeze %125 : memref<1x1x!tpu.dma_semaphore, #tpu.memory_space<semaphore_mem>> -> memref<!tpu.dma_semaphore, #tpu.memory_space<semaphore_mem>>
    tpu.wait_dma2 semaphore(%126 : memref<!tpu.dma_semaphore, #tpu.memory_space<semaphore_mem>>) src(%123 : memref<2x1x16x256xf32, #tpu.memory_space<any>>) dst(%124 : memref<2x1x16x256xf32, #tpu.memory_space<any>>)
    %c2_i32_184 = arith.constant 2 : i32
    %c2_i32_185 = arith.constant 2 : i32
    %c0_i32_186 = arith.constant 0 : i32
    %c0_i32_187 = arith.constant 0 : i32
    %127 = tpu.memref_slice %arg2[%c0_i32_186, %58, %75, %c0_i32_187] : memref<2x3x128x256xf32, #tpu.memory_space<any>> -> memref<2x1x16x256xf32, #tpu.memory_space<any>>
    %c0_i32_188 = arith.constant 0 : i32
    %c2_i32_189 = arith.constant 2 : i32
    %c0_i32_190 = arith.constant 0 : i32
    %128 = tpu.memref_slice %arg3[%c0_i32_188, %c2_i32_189, %75, %c0_i32_190] : memref<2x3x128x256xf32, #tpu.memory_space<any>> -> memref<2x1x16x256xf32, #tpu.memory_space<any>>
    %129 = tpu.memref_slice %arg4[%c2_i32_184, %c2_i32_185] : memref<3x4x!tpu.dma_semaphore, #tpu.memory_space<semaphore_mem>> -> memref<1x1x!tpu.dma_semaphore, #tpu.memory_space<semaphore_mem>>
    %130 = tpu.memref_squeeze %129 : memref<1x1x!tpu.dma_semaphore, #tpu.memory_space<semaphore_mem>> -> memref<!tpu.dma_semaphore, #tpu.memory_space<semaphore_mem>>
    tpu.wait_dma2 semaphore(%130 : memref<!tpu.dma_semaphore, #tpu.memory_space<semaphore_mem>>) src(%127 : memref<2x1x16x256xf32, #tpu.memory_space<any>>) dst(%128 : memref<2x1x16x256xf32, #tpu.memory_space<any>>)
    %c2_i32_191 = arith.constant 2 : i32
    %c3_i32_192 = arith.constant 3 : i32
    %c0_i32_193 = arith.constant 0 : i32
    %c0_i32_194 = arith.constant 0 : i32
    %131 = tpu.memref_slice %arg2[%c0_i32_193, %58, %82, %c0_i32_194] : memref<2x3x128x256xf32, #tpu.memory_space<any>> -> memref<2x1x16x256xf32, #tpu.memory_space<any>>
    %c0_i32_195 = arith.constant 0 : i32
    %c2_i32_196 = arith.constant 2 : i32
    %c0_i32_197 = arith.constant 0 : i32
    %132 = tpu.memref_slice %arg3[%c0_i32_195, %c2_i32_196, %82, %c0_i32_197] : memref<2x3x128x256xf32, #tpu.memory_space<any>> -> memref<2x1x16x256xf32, #tpu.memory_space<any>>
    %133 = tpu.memref_slice %arg4[%c2_i32_191, %c3_i32_192] : memref<3x4x!tpu.dma_semaphore, #tpu.memory_space<semaphore_mem>> -> memref<1x1x!tpu.dma_semaphore, #tpu.memory_space<semaphore_mem>>
    %134 = tpu.memref_squeeze %133 : memref<1x1x!tpu.dma_semaphore, #tpu.memory_space<semaphore_mem>> -> memref<!tpu.dma_semaphore, #tpu.memory_space<semaphore_mem>>
    tpu.wait_dma2 semaphore(%134 : memref<!tpu.dma_semaphore, #tpu.memory_space<semaphore_mem>>) src(%131 : memref<2x1x16x256xf32, #tpu.memory_space<any>>) dst(%132 : memref<2x1x16x256xf32, #tpu.memory_space<any>>)
    return
  }
}

</mosaic_0001>

<llo_original>
// kernel: tpu_custom_call.1
$region0: #{tpu_custom_call.1}
  #allocation0 [shape = 'u32[]', space=smem, size = 0x4, offset = 0x4, fixed_abs, tag = 'smem constant byte address 0x4 - core index']
  #allocation1 [shape = 'u32[144,128]{1,0:T(1,128)}', space=vmem, size = 0x12000, scoped, tag = 'internal scratch']
  #allocation2 [shape = 's32[12]{0}', space=sflag, size = 0x30, scoped, tag = 'scratch operand']
  #allocation3 [shape = 's32[1]{0}', space=sflag, size = 0x4, scoped, tag = 'scoped memory for tpu_custom_call.1']
  #allocation4 [shape = 'u8[512]{0}', space=smem, size = 0x200, scoped, tag = 'prefetched SMEM operand 0']
  #allocation5 [shape = 's32[]', space=sflag, size = 0x4, offset = 0, fixed_abs, tag = 'sflag constant byte address 0x0 - dummy sync flag']
  #allocation7 [shape = 's32[]', space=sflag, size = 0x4, offset = 0, fixed_abs, tag = 'sflag constant byte address 0x0 - dummy sync flag']
  #allocation9 [shape = 's32[]', space=sflag, size = 0x4, offset = 0, fixed_abs, tag = 'sflag constant byte address 0x0 - dummy sync flag']
  #allocation11 [shape = 's32[]', space=sflag, size = 0x4, offset = 0, fixed_abs, tag = 'sflag constant byte address 0x0 - dummy sync flag']
  #allocation13 [shape = 's32[]', space=sflag, size = 0x4, offset = 0, fixed_abs, tag = 'sflag constant byte address 0x0 - dummy sync flag']
  #allocation15 [shape = 's32[]', space=sflag, size = 0x4, offset = 0, fixed_abs, tag = 'sflag constant byte address 0x0 - dummy sync flag']
  #allocation17 [shape = 's32[]', space=sflag, size = 0x4, offset = 0, fixed_abs, tag = 'sflag constant byte address 0x0 - dummy sync flag']
  #allocation19 [shape = 's32[]', space=sflag, size = 0x4, offset = 0, fixed_abs, tag = 'sflag constant byte address 0x0 - dummy sync flag']
  #allocation21 [shape = 's32[]', space=sflag, size = 0x4, offset = 0, fixed_abs, tag = 'sflag constant byte address 0x0 - dummy sync flag']
  #allocation23 [shape = 's32[]', space=sflag, size = 0x4, offset = 0, fixed_abs, tag = 'sflag constant byte address 0x0 - dummy sync flag']
  #allocation25 [shape = 's32[]', space=sflag, size = 0x4, offset = 0, fixed_abs, tag = 'sflag constant byte address 0x0 - dummy sync flag']
  #allocation27 [shape = 's32[]', space=sflag, size = 0x4, offset = 0, fixed_abs, tag = 'sflag constant byte address 0x0 - dummy sync flag']
  %s0 = inlined_call_operand.hbm [shape: s32[3], index: 0, kind: input, shape index: {}]
  %s1 = inlined_call_operand.hbm [shape: f32[2,3,128,256], index: 1, kind: input, shape index: {}]
  %s2 = inlined_call_operand.hbm [shape: f32[2,3,128,256], index: 2, kind: output, shape index: {}]
  %s3 = sld [smem:[#allocation0]]
  $region9: #{tpu_custom_call.1} parent=0
    _
  %s5 = ssub.s32 1, %s3
  %s6 = scalar_select 0, %s5, %s3
  %8 = dma.hbm_to_smem %s0, 16, [#allocation4], [#allocation3]
  %9 = dma.done [#allocation3], 16
  %10 = sfence
  loop: start=0, step=1, limit=2
  $region2: #{tpu_custom_call.1} parent=0 // loop_pre_header
    _
  $region3: #{tpu_custom_call.1} parent=0 // loop_header
    %s12 = sphi 0, %s16
    %p13 = scmp.ge.s32.totalorder %s12, 2
  $region4: #{tpu_custom_call.1} parent=0 // loop_header_branch
    %15 = sbr.rel (%p13) target = $region8
  $region5: #{tpu_custom_call.1} parent=0 // loop_body
    #allocation6 [shape = 'u32[3]{0}', space=smem, size = 0xc, scoped, tag = 'DMA stride descriptor']
    #allocation8 [shape = 'u32[3]{0}', space=smem, size = 0xc, scoped, tag = 'DMA stride descriptor']
    #allocation10 [shape = 'u32[3]{0}', space=smem, size = 0xc, scoped, tag = 'DMA stride descriptor']
    #allocation12 [shape = 'u32[3]{0}', space=smem, size = 0xc, scoped, tag = 'DMA stride descriptor']
    #allocation14 [shape = 'u32[3]{0}', space=smem, size = 0xc, scoped, tag = 'DMA stride descriptor']
    #allocation16 [shape = 'u32[3]{0}', space=smem, size = 0xc, scoped, tag = 'DMA stride descriptor']
    #allocation18 [shape = 'u32[3]{0}', space=smem, size = 0xc, scoped, tag = 'DMA stride descriptor']
    #allocation20 [shape = 'u32[3]{0}', space=smem, size = 0xc, scoped, tag = 'DMA stride descriptor']
    #allocation22 [shape = 'u32[3]{0}', space=smem, size = 0xc, scoped, tag = 'DMA stride descriptor']
    #allocation24 [shape = 'u32[3]{0}', space=smem, size = 0xc, scoped, tag = 'DMA stride descriptor']
    #allocation26 [shape = 'u32[3]{0}', space=smem, size = 0xc, scoped, tag = 'DMA stride descriptor']
    #allocation28 [shape = 'u32[3]{0}', space=smem, size = 0xc, scoped, tag = 'DMA stride descriptor']
    %s17 = sadd.s32 %s12, 1
    %s18 = sld [smem:[#allocation4]]
    %s19 = smul.u32 %s12, 64
    %s20 = sshra.s32 %s19, 3
    %s21 = sand.u32 %s19, 7
    %s22 = smul.u32 %s20, 2
    %s23 = smul.u32 %s18, 32
    %s24 = sadd.s32 %s22, %s23
    %s25 = smul.addr %s24, 128
    %s26 = scalar_lea.hbm %s1, %s25
    %s27 = smul.addr %s22, 128
    %s28 = scalar_lea.hbm %s2, %s27
    %s30 = sshll.u32 1, 14
    %s31 = sxor.u32 4294967295, %s30
    %s34 = sshll.u32 3, 24
    %s35 = sxor.u32 4294967295, %s34
    %s36 = sand.u32 0, %s35
    %s38 = sor.u32 %s36, 0
    %41 = sst [smem:[#allocation6]] 12288
    %s42 = scalar_lea.smem [#allocation6], 1
    %43 = sst [smem:[%s42]] 12288
    %s44 = scalar_lea.smem [#allocation6], 2
    %45 = sst [smem:[%s44]] 32
    %47 = dma.general %s26, 1024, %s28, [#allocation2], [#allocation5], [#allocation6], %s38, 0
    %s48 = smul.u32 %s12, 4
    %s49 = sadd.s32 %s48, 1
    %s50 = smul.u32 %s49, 16
    %s51 = sshra.s32 %s50, 3
    %s52 = sand.u32 %s50, 7
    %s53 = smul.u32 %s51, 2
    %s54 = sadd.s32 %s53, %s23
    %s55 = smul.addr %s54, 128
    %s56 = scalar_lea.hbm %s1, %s55
    %s57 = smul.addr %s53, 128
    %s58 = scalar_lea.hbm %s2, %s57
    %s59 = scalar_lea.sflag [#allocation2], 1
    %s61 = sshll.u32 1, 14
    %s62 = sxor.u32 4294967295, %s61
    %s65 = sshll.u32 3, 24
    %s66 = sxor.u32 4294967295, %s65
    %s67 = sand.u32 0, %s66
    %s69 = sor.u32 %s67, 0
    %72 = sst [smem:[#allocation8]] 12288
    %s73 = scalar_lea.smem [#allocation8], 1
    %74 = sst [smem:[%s73]] 12288
    %s75 = scalar_lea.smem [#allocation8], 2
    %76 = sst [smem:[%s75]] 32
    %78 = dma.general %s56, 1024, %s58, %s59, [#allocation7], [#allocation8], %s69, 0
    %s79 = sadd.s32 %s48, 2
    %s80 = smul.u32 %s79, 16
    %s81 = sshra.s32 %s80, 3
    %s82 = sand.u32 %s80, 7
    %s83 = smul.u32 %s81, 2
    %s84 = sadd.s32 %s83, %s23
    %s85 = smul.addr %s84, 128
    %s86 = scalar_lea.hbm %s1, %s85
    %s87 = smul.addr %s83, 128
    %s88 = scalar_lea.hbm %s2, %s87
    %s89 = scalar_lea.sflag [#allocation2], 2
    %s91 = sshll.u32 1, 14
    %s92 = sxor.u32 4294967295, %s91
    %s95 = sshll.u32 3, 24
    %s96 = sxor.u32 4294967295, %s95
    %s97 = sand.u32 0, %s96
    %s99 = sor.u32 %s97, 0
    %102 = sst [smem:[#allocation10]] 12288
    %s103 = scalar_lea.smem [#allocation10], 1
    %104 = sst [smem:[%s103]] 12288
    %s105 = scalar_lea.smem [#allocation10], 2
    %106 = sst [smem:[%s105]] 32
    %108 = dma.general %s86, 1024, %s88, %s89, [#allocation9], [#allocation10], %s99, 0
    %s109 = sadd.s32 %s48, 3
    %s110 = smul.u32 %s109, 16
    %s111 = sshra.s32 %s110, 3
    %s112 = sand.u32 %s110, 7
    %s113 = smul.u32 %s111, 2
    %s114 = sadd.s32 %s113, %s23
    %s115 = smul.addr %s114, 128
    %s116 = scalar_lea.hbm %s1, %s115
    %s117 = smul.addr %s113, 128
    %s118 = scalar_lea.hbm %s2, %s117
    %s119 = scalar_lea.sflag [#allocation2], 3
    %s121 = sshll.u32 1, 14
    %s122 = sxor.u32 4294967295, %s121
    %s125 = sshll.u32 3, 24
    %s126 = sxor.u32 4294967295, %s125
    %s127 = sand.u32 0, %s126
    %s129 = sor.u32 %s127, 0
    %132 = sst [smem:[#allocation12]] 12288
    %s133 = scalar_lea.smem [#allocation12], 1
    %134 = sst [smem:[%s133]] 12288
    %s135 = scalar_lea.smem [#allocation12], 2
    %136 = sst [smem:[%s135]] 32
    %138 = dma.general %s116, 1024, %s118, %s119, [#allocation11], [#allocation12], %s129, 0
    %s139 = sld [smem:[#allocation4 + $0x1]]
    %s140 = smul.u32 %s139, 32
    %s141 = sadd.s32 %s22, %s140
    %s142 = smul.addr %s141, 128
    %s143 = scalar_lea.hbm %s1, %s142
    %s144 = sadd.s32 %s22, 32
    %s145 = smul.addr %s144, 128
    %s146 = scalar_lea.hbm %s2, %s145
    %s147 = scalar_lea.sflag [#allocation2], 4
    %s149 = sshll.u32 1, 14
    %s150 = sxor.u32 4294967295, %s149
    %s153 = sshll.u32 3, 24
    %s154 = sxor.u32 4294967295, %s153
    %s155 = sand.u32 0, %s154
    %s157 = sor.u32 %s155, 0
    %160 = sst [smem:[#allocation14]] 12288
    %s161 = scalar_lea.smem [#allocation14], 1
    %162 = sst [smem:[%s161]] 12288
    %s163 = scalar_lea.smem [#allocation14], 2
    %164 = sst [smem:[%s163]] 32
    %166 = dma.general %s143, 1024, %s146, %s147, [#allocation13], [#allocation14], %s157, 0
    %s167 = sadd.s32 %s53, %s140
    %s168 = smul.addr %s167, 128
    %s169 = scalar_lea.hbm %s1, %s168
    %s170 = sadd.s32 %s53, 32
    %s171 = smul.addr %s170, 128
    %s172 = scalar_lea.hbm %s2, %s171
    %s173 = scalar_lea.sflag [#allocation2], 5
    %s175 = sshll.u32 1, 14
    %s176 = sxor.u32 4294967295, %s175
    %s179 = sshll.u32 3, 24
    %s180 = sxor.u32 4294967295, %s179
    %s181 = sand.u32 0, %s180
    %s183 = sor.u32 %s181, 0
    %186 = sst [smem:[#allocation16]] 12288
    %s187 = scalar_lea.smem [#allocation16], 1
    %188 = sst [smem:[%s187]] 12288
    %s189 = scalar_lea.smem [#allocation16], 2
    %190 = sst [smem:[%s189]] 32
    %192 = dma.general %s169, 1024, %s172, %s173, [#allocation15], [#allocation16], %s183, 0
    %s193 = sadd.s32 %s83, %s140
    %s194 = smul.addr %s193, 128
    %s195 = scalar_lea.hbm %s1, %s194
    %s196 = sadd.s32 %s83, 32
    %s197 = smul.addr %s196, 128
    %s198 = scalar_lea.hbm %s2, %s197
    %s199 = scalar_lea.sflag [#allocation2], 6
    %s201 = sshll.u32 1, 14
    %s202 = sxor.u32 4294967295, %s201
    %s205 = sshll.u32 3, 24
    %s206 = sxor.u32 4294967295, %s205
    %s207 = sand.u32 0, %s206
    %s209 = sor.u32 %s207, 0
    %212 = sst [smem:[#allocation18]] 12288
    %s213 = scalar_lea.smem [#allocation18], 1
    %214 = sst [smem:[%s213]] 12288
    %s215 = scalar_lea.smem [#allocation18], 2
    %216 = sst [smem:[%s215]] 32
    %218 = dma.general %s195, 1024, %s198, %s199, [#allocation17], [#allocation18], %s209, 0
    %s219 = sadd.s32 %s113, %s140
    %s220 = smul.addr %s219, 128
    %s221 = scalar_lea.hbm %s1, %s220
    %s222 = sadd.s32 %s113, 32
    %s223 = smul.addr %s222, 128
    %s224 = scalar_lea.hbm %s2, %s223
    %s225 = scalar_lea.sflag [#allocation2], 7
    %s227 = sshll.u32 1, 14
    %s228 = sxor.u32 4294967295, %s227
    %s231 = sshll.u32 3, 24
    %s232 = sxor.u32 4294967295, %s231
    %s233 = sand.u32 0, %s232
    %s235 = sor.u32 %s233, 0
    %238 = sst [smem:[#allocation20]] 12288
    %s239 = scalar_lea.smem [#allocation20], 1
    %240 = sst [smem:[%s239]] 12288
    %s241 = scalar_lea.smem [#allocation20], 2
    %242 = sst [smem:[%s241]] 32
    %244 = dma.general %s221, 1024, %s224, %s225, [#allocation19], [#allocation20], %s235, 0
    %s245 = sld [smem:[#allocation4 + $0x2]]
    %s246 = smul.u32 %s245, 32
    %s247 = sadd.s32 %s22, %s246
    %s248 = smul.addr %s247, 128
    %s249 = scalar_lea.hbm %s1, %s248
    %s250 = sadd.s32 %s22, 64
    %s251 = smul.addr %s250, 128
    %s252 = scalar_lea.hbm %s2, %s251
    %s253 = scalar_lea.sflag [#allocation2], 8
    %s255 = sshll.u32 1, 14
    %s256 = sxor.u32 4294967295, %s255
    %s259 = sshll.u32 3, 24
    %s260 = sxor.u32 4294967295, %s259
    %s261 = sand.u32 0, %s260
    %s263 = sor.u32 %s261, 0
    %266 = sst [smem:[#allocation22]] 12288
    %s267 = scalar_lea.smem [#allocation22], 1
    %268 = sst [smem:[%s267]] 12288
    %s269 = scalar_lea.smem [#allocation22], 2
    %270 = sst [smem:[%s269]] 32
    %272 = dma.general %s249, 1024, %s252, %s253, [#allocation21], [#allocation22], %s263, 0
    %s273 = sadd.s32 %s53, %s246
    %s274 = smul.addr %s273, 128
    %s275 = scalar_lea.hbm %s1, %s274
    %s276 = sadd.s32 %s53, 64
    %s277 = smul.addr %s276, 128
    %s278 = scalar_lea.hbm %s2, %s277
    %s279 = scalar_lea.sflag [#allocation2], 9
    %s281 = sshll.u32 1, 14
    %s282 = sxor.u32 4294967295, %s281
    %s285 = sshll.u32 3, 24
    %s286 = sxor.u32 4294967295, %s285
    %s287 = sand.u32 0, %s286
    %s289 = sor.u32 %s287, 0
    %292 = sst [smem:[#allocation24]] 12288
    %s293 = scalar_lea.smem [#allocation24], 1
    %294 = sst [smem:[%s293]] 12288
    %s295 = scalar_lea.smem [#allocation24], 2
    %296 = sst [smem:[%s295]] 32
    %298 = dma.general %s275, 1024, %s278, %s279, [#allocation23], [#allocation24], %s289, 0
    %s299 = sadd.s32 %s83, %s246
    %s300 = smul.addr %s299, 128
    %s301 = scalar_lea.hbm %s1, %s300
    %s302 = sadd.s32 %s83, 64
    %s303 = smul.addr %s302, 128
    %s304 = scalar_lea.hbm %s2, %s303
    %s305 = scalar_lea.sflag [#allocation2], 10
    %s307 = sshll.u32 1, 14
    %s308 = sxor.u32 4294967295, %s307
    %s311 = sshll.u32 3, 24
    %s312 = sxor.u32 4294967295, %s311
    %s313 = sand.u32 0, %s312
    %s315 = sor.u32 %s313, 0
    %318 = sst [smem:[#allocation26]] 12288
    %s319 = scalar_lea.smem [#allocation26], 1
    %320 = sst [smem:[%s319]] 12288
    %s321 = scalar_lea.smem [#allocation26], 2
    %322 = sst [smem:[%s321]] 32
    %324 = dma.general %s301, 1024, %s304, %s305, [#allocation25], [#allocation26], %s315, 0
    %s325 = sadd.s32 %s113, %s246
    %s326 = smul.addr %s325, 128
    %s327 = scalar_lea.hbm %s1, %s326
    %s328 = sadd.s32 %s113, 64
    %s329 = smul.addr %s328, 128
    %s330 = scalar_lea.hbm %s2, %s329
    %s331 = scalar_lea.sflag [#allocation2], 11
    %s333 = sshll.u32 1, 14
    %s334 = sxor.u32 4294967295, %s333
    %s337 = sshll.u32 3, 24
    %s338 = sxor.u32 4294967295, %s337
    %s339 = sand.u32 0, %s338
    %s341 = sor.u32 %s339, 0
    %344 = sst [smem:[#allocation28]] 12288
    %s345 = scalar_lea.smem [#allocation28], 1
    %346 = sst [smem:[%s345]] 12288
    %s347 = scalar_lea.smem [#allocation28], 2
    %348 = sst [smem:[%s347]] 32
    %350 = dma.general %s327, 1024, %s330, %s331, [#allocation27], [#allocation28], %s341, 0
    %s351 = smul.u32 8, 2
    %s352 = smul.u32 %s351, 1
    %s353 = smul.u32 %s352, 2
    %s354 = smul.u32 %s353, 2
    %s355 = sshll.u32 %s354, 4
    %356 = dma.done [#allocation2], %s355
    %s357 = sshll.u32 %s354, 4
    %358 = dma.done %s59, %s357
    %s359 = sshll.u32 %s354, 4
    %360 = dma.done %s89, %s359
    %s361 = sshll.u32 %s354, 4
    %362 = dma.done %s119, %s361
    %s363 = sshll.u32 %s354, 4
    %364 = dma.done %s147, %s363
    %s365 = sshll.u32 %s354, 4
    %366 = dma.done %s173, %s365
    %s367 = sshll.u32 %s354, 4
    %368 = dma.done %s199, %s367
    %s369 = sshll.u32 %s354, 4
    %370 = dma.done %s225, %s369
    %s371 = sshll.u32 %s354, 4
    %372 = dma.done %s253, %s371
    %s373 = sshll.u32 %s354, 4
    %374 = dma.done %s279, %s373
    %s375 = sshll.u32 %s354, 4
    %376 = dma.done %s305, %s375
    %s377 = sshll.u32 %s354, 4
    %378 = dma.done %s331, %s377
  $region6: #{tpu_custom_call.1} parent=0 // loop_footer
    %s16 = sadd.s32 1, %s12
  $region7: #{tpu_custom_call.1} parent=0 // loop_footer_branch
    %11 = sbr.rel target = $region3
  $region8: #{tpu_custom_call.1} parent=0 // loop_exit
    _
  %379 = vsyncmov [#allocation2]
  %s380 = vpop.sfrf %379
  %p381 = scmp.eq.s32.totalorder %s380, 0
  %p382 = pneg %p381
  %384 = shalt.err (%p382)
  %s385 = scalar_lea.sflag [#allocation2], 1
  %386 = vsyncmov %s385
  %s387 = vpop.sfrf %386
  %p388 = scmp.eq.s32.totalorder %s387, 0
  %p389 = pneg %p388
  %391 = shalt.err (%p389)
  %s392 = scalar_lea.sflag [#allocation2], 2
  %393 = vsyncmov %s392
  %s394 = vpop.sfrf %393
  %p395 = scmp.eq.s32.totalorder %s394, 0
  %p396 = pneg %p395
  %398 = shalt.err (%p396)
  %s399 = scalar_lea.sflag [#allocation2], 3
  %400 = vsyncmov %s399
  %s401 = vpop.sfrf %400
  %p402 = scmp.eq.s32.totalorder %s401, 0
  %p403 = pneg %p402
  %405 = shalt.err (%p403)
  %s406 = scalar_lea.sflag [#allocation2], 4
  %407 = vsyncmov %s406
  %s408 = vpop.sfrf %407
  %p409 = scmp.eq.s32.totalorder %s408, 0
  %p410 = pneg %p409
  %412 = shalt.err (%p410)
  %s413 = scalar_lea.sflag [#allocation2], 5
  %414 = vsyncmov %s413
  %s415 = vpop.sfrf %414
  %p416 = scmp.eq.s32.totalorder %s415, 0
  %p417 = pneg %p416
  %419 = shalt.err (%p417)
  %s420 = scalar_lea.sflag [#allocation2], 6
  %421 = vsyncmov %s420
  %s422 = vpop.sfrf %421
  %p423 = scmp.eq.s32.totalorder %s422, 0
  %p424 = pneg %p423
  %426 = shalt.err (%p424)
  %s427 = scalar_lea.sflag [#allocation2], 7
  %428 = vsyncmov %s427
  %s429 = vpop.sfrf %428
  %p430 = scmp.eq.s32.totalorder %s429, 0
  %p431 = pneg %p430
  %433 = shalt.err (%p431)
  %s434 = scalar_lea.sflag [#allocation2], 8
  %435 = vsyncmov %s434
  %s436 = vpop.sfrf %435
  %p437 = scmp.eq.s32.totalorder %s436, 0
  %p438 = pneg %p437
  %440 = shalt.err (%p438)
  %s441 = scalar_lea.sflag [#allocation2], 9
  %442 = vsyncmov %s441
  %s443 = vpop.sfrf %442
  %p444 = scmp.eq.s32.totalorder %s443, 0
  %p445 = pneg %p444
  %447 = shalt.err (%p445)
  %s448 = scalar_lea.sflag [#allocation2], 10
  %449 = vsyncmov %s448
  %s450 = vpop.sfrf %449
  %p451 = scmp.eq.s32.totalorder %s450, 0
  %p452 = pneg %p451
  %454 = shalt.err (%p452)
  %s455 = scalar_lea.sflag [#allocation2], 11
  %456 = vsyncmov %s455
  %s457 = vpop.sfrf %456
  %p458 = scmp.eq.s32.totalorder %s457, 0
  %p459 = pneg %p458
  %461 = shalt.err (%p459)

</llo_original>
